<compile_context>
chip_gen: v7x
topology: tpu7x:2x2x1
jax: 0.10.0
libtpu: 0.0.40
codegen_flags: <defaults>
</compile_context>

<pallas_src>
import jax
import jax.numpy as jnp
import numpy as np
from jax import lax
from jax.experimental import pallas as pl
from jax.experimental.pallas import tpu as pltpu


def _round_up(v, m):
    return (v + m - 1) // m * m


# ---------------------------------------------------------------------------
# Static index math replicating torch.nn.functional.unfold (NCHW, padding=0).
# ---------------------------------------------------------------------------
def _unfold_index_map(chw, kernel_size, stride, dilation):
    """Flat per-sample gather indices for F.unfold.

    Returns idx of shape (C*kh*kw, out_h*out_w) such that
        unfold(x)[n, p, l] == x.reshape(N, -1)[n, idx[p, l]]
    with torch's channel-major / kernel-row-major ordering.
    """
    C, H, W = chw
    kh, kw = kernel_size
    sh, sw = stride
    dh, dw = dilation
    out_h = (H - dh * (kh - 1) - 1) // sh + 1
    out_w = (W - dw * (kw - 1) - 1) // sw + 1
    assert out_h > 0 and out_w > 0, "unfold window does not fit the input"
    c_off = (np.arange(C) * H * W)[:, None, None]
    i_off = (np.arange(kh) * dh * W)[None, :, None]
    j_off = (np.arange(kw) * dw)[None, None, :]
    patch = (c_off + i_off + j_off).reshape(-1)                    # (C*kh*kw,)
    base = (np.arange(out_h)[:, None] * sh * W
            + np.arange(out_w)[None, :] * sw).reshape(-1)          # (L,)
    return patch[:, None] + base[None, :]                          # (C*kh*kw, L)


def _tdnn_gather_indices(chw, context_size, input_dim, dilation):
    """Compose the module's two unfolds into one gather index map (L2, ctx*D)."""
    ks = (context_size, input_dim)
    st = (1, input_dim)
    dl = (dilation, 1)
    idx1 = _unfold_index_map(chw, ks, st, dl)                      # (C*ctx*D, L1)
    idx2 = _unfold_index_map((1,) + idx1.shape, ks, st, dl)        # (ctx*D, L2)
    composed = idx1.reshape(-1)[idx2]                              # (ctx*D, L2)
    return np.ascontiguousarray(composed.T).astype(np.int32)       # (L2, ctx*D)


def _vmem_budgets():
    """Per-generation (tile byte budget, vmem_limit_bytes)."""
    try:
        info = pltpu.get_tpu_info()
        cap = int(getattr(info, "vmem_capacity_bytes", 64 * 1024 * 1024))
    except Exception:
        cap = 64 * 1024 * 1024
    if cap >= 96 * 1024 * 1024:                     # v5e / v6e: 128 MiB VMEM
        return 12 * 1024 * 1024, 96 * 1024 * 1024
    return 4 * 1024 * 1024, 32 * 1024 * 1024        # v7x: 64 MiB VMEM


# ---------------------------------------------------------------------------
# Pallas kernel: bf16 Linear (bias folded) + ReLU, per-sample sum / sum-of-sq.
# ---------------------------------------------------------------------------
def _tdnn_kernel(u_ref, w_ref, psum_ref, ssq_ref):
    l = pl.program_id(1)

    @pl.when(l == 0)
    def _init():
        psum_ref[...] = jnp.zeros_like(psum_ref)
        ssq_ref[...] = jnp.zeros_like(ssq_ref)

    # Linear with the bias folded into column F of the bf16 operands; one
    # lane-dense MXU matmul with f32 accumulation, then ReLU.  Padded window
    # rows are all-zero (including the ones column) so they ReLU to exact 0.
    y = jnp.dot(u_ref[...], w_ref[...], preferred_element_type=jnp.float32)
    y = jnp.maximum(y, 0.0)
    # TODO(synk): nn.Dropout(p) applied as identity (eval behaviour); torch
    # train-mode dropout RNG is not reproducible here.

    # Column sums on the MXU (ones-vector matmul) instead of axis-0 VPU
    # reductions; only the ReLU and the square remain on the VPU.  All 8
    # result rows are identical — the JAX epilogue reads row 0.
    ones = jnp.ones((8, y.shape[0]), jnp.float32)
    psum_ref[...] += jnp.dot(ones, y, preferred_element_type=jnp.float32)
    ssq_ref[...] += jnp.dot(ones, y * y, preferred_element_type=jnp.float32)


def tdnn_forward(x, params, *, context_size, input_dim, dilation=1,
                 tile_l2=None, eps=1e-5):
    """Forward pass of the TDNN module via a Pallas TPU kernel.

    x: (N, C, H, W) float array (module usage: C=1, W=input_dim).
    params: (w_t, b, gamma, beta) with w_t (ctx*D, O), b/gamma/beta (1, O).
    """
    w_t, b, gamma, beta = params
    N = x.shape[0]
    F = context_size * input_dim
    O = w_t.shape[1]
    assert w_t.shape[0] == F

    idx = _tdnn_gather_indices(x.shape[1:], context_size, input_dim, dilation)
    L2 = idx.shape[0]

    F_pad = _round_up(F + 1, 128)      # +1 column of ones for the folded bias
    O_pad = _round_up(O, 128)

    tile_budget, vmem_limit = _vmem_budgets()
    bytes_per_row = F_pad * 2          # bf16 window rows
    if tile_l2 is None:
        tile_l2 = max(8, min(_round_up(L2, 8),
                             (tile_budget // bytes_per_row) // 8 * 8))
    else:
        tile_l2 = max(8, min(_round_up(tile_l2, 8), _round_up(L2, 8)))
    L2_pad = _round_up(L2, tile_l2)
    num_l_tiles = L2_pad // tile_l2

    # Single composed gather replaces the double unfold + transpose; done in
    # bf16 so the dominant HBM stream is half-width.
    # TODO(synk): gathering inside the kernel from raw x (pl.ANY + manual DMA
    # with scalar-prefetched offsets) would also drop the ctx-times expansion;
    # kept wrapper-side here for robustness.
    xf = x.reshape(N, -1).astype(jnp.bfloat16)
    u = jnp.take(xf, jnp.asarray(idx), axis=1)                     # (N, L2, F)
    u = jnp.pad(u, ((0, 0), (0, L2_pad - L2), (0, F_pad - F)))
    u = u.at[:, :L2, F].set(1.0)                                   # bias column
    u2d = u.reshape(N * L2_pad, F_pad)                             # (N*L2_pad, F_pad)

    w_pad = jnp.zeros((F_pad, O_pad), jnp.bfloat16)
    w_pad = w_pad.at[:F, :O].set(w_t.astype(jnp.bfloat16))
    w_pad = w_pad.at[F, :O].set(b.reshape(-1).astype(jnp.bfloat16))  # folded bias

    psum8, ssq8 = pl.pallas_call(
        _tdnn_kernel,
        out_shape=(jax.ShapeDtypeStruct((N * 8, O_pad), jnp.float32),
                   jax.ShapeDtypeStruct((N * 8, O_pad), jnp.float32)),
        grid_spec=pltpu.PrefetchScalarGridSpec(
            num_scalar_prefetch=0,
            grid=(N, num_l_tiles),
            in_specs=[
                pl.BlockSpec((tile_l2, F_pad),
                             lambda n, l: (n * num_l_tiles + l, 0)),
                pl.BlockSpec((F_pad, O_pad), lambda n, l: (0, 0)),
            ],
            out_specs=[
                pl.BlockSpec((8, O_pad), lambda n, l: (n, 0)),
                pl.BlockSpec((8, O_pad), lambda n, l: (n, 0)),
            ],
        ),
        compiler_params=pltpu.CompilerParams(
            # Samples are independent -> megacore split on v7x; the window-tile
            # axis accumulates into the per-sample resident output blocks.
            dimension_semantics=("parallel", "arbitrary"),
            vmem_limit_bytes=vmem_limit,
        ),
    )(u2d, w_pad)

    # Tiny O(N*O) epilogue in plain JAX: BatchNorm (training-mode batch stats,
    # biased variance) fused with the mean over windows into one per-channel
    # affine applied to the per-sample means.  Padded rows contributed 0.
    psum = psum8.reshape(N, 8, O_pad)[:, 0, :O]                    # (N, O)
    ssq = ssq8.reshape(N, 8, O_pad)[:, 0, :O]
    cnt = float(N * L2)
    mean = jnp.sum(psum, axis=0, keepdims=True) / cnt
    # TODO(synk): single-pass variance (E[y^2]-E[y]^2) in f32; adequate for
    # ReLU'd activations but less robust than a two-pass when mean^2 >> var.
    var = jnp.maximum(jnp.sum(ssq, axis=0, keepdims=True) / cnt - mean * mean, 0.0)
    # TODO(synk): BatchNorm uses training-mode batch statistics (module default);
    # eval-mode running_mean/var and the running-stat update are not modeled.
    scale = gamma.reshape(1, O).astype(jnp.float32) * lax.rsqrt(var + eps)
    shift = beta.reshape(1, O).astype(jnp.float32) - mean * scale
    return (psum / float(L2)) * scale + shift                      # (N, O)


# ---------------------------------------------------------------------------
# Pure-JAX reference (mirrors the torch forward) — used only for verification.
# ---------------------------------------------------------------------------
def _unfold_ref(x, kernel_size, stride, dilation):
    N, C, H, W = x.shape
    kh, kw = kernel_size
    sh, sw = stride
    dh, dw = dilation
    out_h = (H - dh * (kh - 1) - 1) // sh + 1
    out_w = (W - dw * (kw - 1) - 1) // sw + 1
    cols = []
    for c in range(C):
        for i in range(kh):
            for j in range(kw):
                r0, c0 = i * dh, j * dw
                patch = x[:, c,
                          r0:r0 + sh * (out_h - 1) + 1:sh,
                          c0:c0 + sw * (out_w - 1) + 1:sw]
                cols.append(patch.reshape(N, out_h * out_w))
    return jnp.stack(cols, axis=1)


def _reference_forward(x, params, *, context_size, input_dim, dilation, eps=1e-5):
    w_t, b, gamma, beta = params
    ks, st, dl = (context_size, input_dim), (1, input_dim), (dilation, 1)
    u = _unfold_ref(x, ks, st, dl)
    u = _unfold_ref(u[:, None, :, :], ks, st, dl)
    u = jnp.transpose(u, (0, 2, 1)).astype(jnp.float32)
    y = jnp.einsum('nlf,fo->nlo', u, w_t,
                   precision=lax.Precision.HIGHEST) + b[None, :, :]
    y = jnp.maximum(y, 0.0)
    mean = jnp.mean(y, axis=(0, 1), keepdims=True)
    var = jnp.mean(jnp.square(y - mean), axis=(0, 1), keepdims=True)
    y = (y - mean) * lax.rsqrt(var + eps)
    y = y * gamma[None, :, :] + beta[None, :, :]
    return jnp.mean(y, axis=1)


if __name__ == "__main__":
    input_dim = 8
    output_dim = 6
    context_size = 3
    dilation = 1
    N, C, seq_len = 2, 1, 18          # x: NCHW = (2, 1, 18, 8)

    key = jax.random.PRNGKey(0)
    kx, kw, kb = jax.random.split(key, 3)
    x = jax.random.normal(kx, (N, C, seq_len, input_dim), dtype=jnp.float32)

    # nn.Linear(input_dim*context_size, output_dim) — deterministic synthetic init.
    fan_in = input_dim * context_size
    bound = 1.0 / (fan_in ** 0.5)
    w_t = jax.random.uniform(kw, (fan_in, output_dim),
                             minval=-bound, maxval=bound, dtype=jnp.float32)
    b = jax.random.uniform(kb, (1, output_dim),
                           minval=-bound, maxval=bound, dtype=jnp.float32)
    gamma = jnp.ones((1, output_dim), jnp.float32)   # BatchNorm1d affine
    beta = jnp.zeros((1, output_dim), jnp.float32)
    params = (w_t, b, gamma, beta)

    # tile_l2=16 forces a multi-tile window axis (L2=44 -> 3 tiles per sample)
    # so the accumulate-over-tiles path is exercised even at this toy size.
    out = jax.block_until_ready(
        tdnn_forward(x, params, context_size=context_size,
                     input_dim=input_dim, dilation=dilation, tile_l2=16))
    assert out.shape == (N, output_dim)

    # Tight check vs. a reference using the same bf16 matmul operands
    # (verifies the gather / bias-fold / reductions / BN+mean epilogue).
    bf = lambda a: a.astype(jnp.bfloat16).astype(jnp.float32)
    ref_bf16 = jax.block_until_ready(_reference_forward(
        bf(x), (bf(w_t), bf(b), gamma, beta), context_size=context_size,
        input_dim=input_dim, dilation=dilation))
    np.testing.assert_allclose(np.asarray(out), np.asarray(ref_bf16),
                               rtol=2e-3, atol=2e-3)

    # Looser check vs. the full-f32 module semantics (bf16 operand rounding).
    ref_f32 = jax.block_until_ready(_reference_forward(
        x, params, context_size=context_size, input_dim=input_dim,
        dilation=dilation))
    np.testing.assert_allclose(np.asarray(out), np.asarray(ref_f32),
                               rtol=5e-2, atol=5e-2)
    print("KERNEL_OK")
</pallas_src>

<mosaic_0001>
module attributes {stable_mosaic.version = 11 : i64} {
  func.func @_tdnn_kernel(%arg0: i32, %arg1: i32, %arg2: memref<16x128xbf16, #tpu.memory_space<vmem>>, %arg3: memref<128x128xbf16, #tpu.memory_space<vmem>>, %arg4: memref<8x128xf32, #tpu.memory_space<vmem>>, %arg5: memref<8x128xf32, #tpu.memory_space<vmem>>) attributes {dimension_semantics = [#tpu.dimension_semantics<parallel>, #tpu.dimension_semantics<arbitrary>], iteration_bounds = array<i64: 2, 3>, scalar_prefetch = 0 : i64, scratch_operands = 0 : i64, tpu.core_type = #tpu.core_type<tc>, window_params = [{transform_indices = @transform_0, window_bounds = array<i64: 16, 128>}, {pipeline_mode = #tpu.pipeline_mode<synchronous>, transform_indices = @transform_1, window_bounds = array<i64: 128, 128>}, {transform_indices = @transform_2, window_bounds = array<i64: 8, 128>}, {transform_indices = @transform_3, window_bounds = array<i64: 8, 128>}]} {
    %c0_i32 = arith.constant 0 : i32
    %0 = arith.cmpi eq, %arg1, %c0_i32 : i32
    %1 = arith.extui %0 : i1 to i32
    %c0_i32_0 = arith.constant 0 : i32
    %2 = arith.cmpi ne, %1, %c0_i32_0 : i32
    scf.if %2 {
      %cst_16 = arith.constant 0.000000e+00 : f32
      %18 = vector.broadcast %cst_16 : f32 to vector<8x128xf32>
      %c0_17 = arith.constant 0 : index
      %c0_18 = arith.constant 0 : index
      %19 = vector.load %arg4[%c0_17, %c0_18] : memref<8x128xf32, #tpu.memory_space<vmem>>, vector<8x128xf32>
      tpu.vector_store %arg4[%c0_17, %c0_18], %18 {strides = array<i32>} : memref<8x128xf32, #tpu.memory_space<vmem>>, vector<8x128xf32>,
      %cst_19 = arith.constant 0.000000e+00 : f32
      %20 = vector.broadcast %cst_19 : f32 to vector<8x128xf32>
      %c0_20 = arith.constant 0 : index
      %c0_21 = arith.constant 0 : index
      %21 = vector.load %arg5[%c0_20, %c0_21] : memref<8x128xf32, #tpu.memory_space<vmem>>, vector<8x128xf32>
      tpu.vector_store %arg5[%c0_20, %c0_21], %20 {strides = array<i32>} : memref<8x128xf32, #tpu.memory_space<vmem>>, vector<8x128xf32>,
    } else {
    }
    %c0 = arith.constant 0 : index
    %c0_1 = arith.constant 0 : index
    %3 = vector.load %arg2[%c0, %c0_1] : memref<16x128xbf16, #tpu.memory_space<vmem>>, vector<16x128xbf16>
    %c0_2 = arith.constant 0 : index
    %c0_3 = arith.constant 0 : index
    %4 = vector.load %arg3[%c0_2, %c0_3] : memref<128x128xbf16, #tpu.memory_space<vmem>>, vector<128x128xbf16>
    %cst = arith.constant dense<0.000000e+00> : vector<16x128xf32>
    %5 = tpu.matmul %3, %4, %cst {dimension_numbers = #tpu.dot_dimension_numbers<[1], [0], [0], [1], [0, 0, 1, 1], [], []>} : vector<16x128xbf16>, vector<128x128xbf16>, vector<16x128xf32> -> vector<16x128xf32>
    %cst_4 = arith.constant 0.000000e+00 : f32
    %6 = vector.broadcast %cst_4 : f32 to vector<16x128xf32>
    %7 = arith.maximumf %5, %6 : vector<16x128xf32>
    %cst_5 = arith.constant 1.000000e+00 : f32
    %8 = vector.broadcast %cst_5 : f32 to vector<8x16xf32>
    %c0_6 = arith.constant 0 : index
    %c0_7 = arith.constant 0 : index
    %9 = vector.load %arg4[%c0_6, %c0_7] : memref<8x128xf32, #tpu.memory_space<vmem>>, vector<8x128xf32>
    %cst_8 = arith.constant dense<0.000000e+00> : vector<8x128xf32>
    %10 = tpu.matmul %8, %7, %cst_8 {dimension_numbers = #tpu.dot_dimension_numbers<[1], [0], [0], [1], [0, 0, 1, 1], [], []>} : vector<8x16xf32>, vector<16x128xf32>, vector<8x128xf32> -> vector<8x128xf32>
    %11 = arith.addf %9, %10 : vector<8x128xf32>
    %c0_9 = arith.constant 0 : index
    %c0_10 = arith.constant 0 : index
    %12 = vector.load %arg4[%c0_9, %c0_10] : memref<8x128xf32, #tpu.memory_space<vmem>>, vector<8x128xf32>
    tpu.vector_store %arg4[%c0_9, %c0_10], %11 {strides = array<i32>} : memref<8x128xf32, #tpu.memory_space<vmem>>, vector<8x128xf32>,
    %c0_11 = arith.constant 0 : index
    %c0_12 = arith.constant 0 : index
    %13 = vector.load %arg5[%c0_11, %c0_12] : memref<8x128xf32, #tpu.memory_space<vmem>>, vector<8x128xf32>
    %14 = arith.mulf %7, %7 : vector<16x128xf32>
    %cst_13 = arith.constant dense<0.000000e+00> : vector<8x128xf32>
    %15 = tpu.matmul %8, %14, %cst_13 {dimension_numbers = #tpu.dot_dimension_numbers<[1], [0], [0], [1], [0, 0, 1, 1], [], []>} : vector<8x16xf32>, vector<16x128xf32>, vector<8x128xf32> -> vector<8x128xf32>
    %16 = arith.addf %13, %15 : vector<8x128xf32>
    %c0_14 = arith.constant 0 : index
    %c0_15 = arith.constant 0 : index
    %17 = vector.load %arg5[%c0_14, %c0_15] : memref<8x128xf32, #tpu.memory_space<vmem>>, vector<8x128xf32>
    tpu.vector_store %arg5[%c0_14, %c0_15], %16 {strides = array<i32>} : memref<8x128xf32, #tpu.memory_space<vmem>>, vector<8x128xf32>,
    return
  }
  func.func @transform_0(%arg0: i32, %arg1: i32) -> (i32, i32) {
    %c3_i32 = arith.constant 3 : i32
    %0 = arith.muli %arg0, %c3_i32 : i32
    %1 = arith.addi %0, %arg1 : i32
    %c0_i32 = arith.constant 0 : i32
    %c0_i32_0 = arith.constant 0 : i32
    return %1, %c0_i32 : i32, i32
  }
  func.func @transform_1(%arg0: i32, %arg1: i32) -> (i32, i32) {
    %c0_i32 = arith.constant 0 : i32
    %c0_i32_0 = arith.constant 0 : i32
    %c0_i32_1 = arith.constant 0 : i32
    return %c0_i32, %c0_i32_0 : i32, i32
  }
  func.func @transform_2(%arg0: i32, %arg1: i32) -> (i32, i32) {
    %c0_i32 = arith.constant 0 : i32
    %c0_i32_0 = arith.constant 0 : i32
    return %arg0, %c0_i32 : i32, i32
  }
  func.func @transform_3(%arg0: i32, %arg1: i32) -> (i32, i32) {
    %c0_i32 = arith.constant 0 : i32
    %c0_i32_0 = arith.constant 0 : i32
    return %arg0, %c0_i32 : i32, i32
  }
}

</mosaic_0001>

<llo_original>
// kernel: tpu_custom_call.1
$region0: #{tpu_custom_call.1}
  #allocation0 [shape = 'u32[]', space=smem, size = 0x4, offset = 0x4, fixed_abs, tag = 'smem constant byte address 0x4 - core index']
  #allocation1 [shape = 'u32[144,128]{1,0:T(1,128)}', space=vmem, size = 0x12000, scoped, tag = 'internal scratch']
  %s0 = inlined_call_operand.hbm [shape: bf16[96,128], index: 0, kind: input, shape index: {}]
  %s1 = inlined_call_operand.hbm [shape: bf16[128,128], index: 1, kind: input, shape index: {}]
  %s2 = inlined_call_operand.hbm [shape: f32[16,128], index: 2, kind: output, shape index: {0}]
  %s3 = inlined_call_operand.hbm [shape: f32[16,128], index: 3, kind: output, shape index: {1}]
  %4 = xla_tuple %s2, %s3
  %s5 = sld [smem:[#allocation0]]
  $region61: #{tpu_custom_call.1} parent=0
    _
  %s7 = ssub.s32 1, %s5
  %s8 = scalar_select 0, %s7, %s5
  $region1: #{tpu_custom_call.1} parent=0
    #allocation2 [shape = 'u8[8192]{0}', space=vmem, size = 0x2000, scoped, tag = 'input window, operand 0']
    #allocation3 [shape = 's32[2]{0}', space=sflag, size = 0x8, scoped, tag = 'scoped memory for tpu_custom_call.1']
    #allocation4 [shape = 's32[2]{0}', space=sflag, size = 0x8, scoped, tag = 'scoped memory for tpu_custom_call.1']
    #allocation5 [shape = 'u8[32768]{0}', space=vmem, size = 0x8000, scoped, tag = 'input window, operand 1, single buffered']
    #allocation6 [shape = 's32[1]{0}', space=sflag, size = 0x4, scoped, tag = 'scoped memory for tpu_custom_call.1']
    #allocation7 [shape = 'u8[8192]{0}', space=vmem, size = 0x2000, scoped, tag = 'output window, operand 0']
    #allocation8 [shape = 'u8[8192]{0}', space=vmem, size = 0x2000, scoped, tag = 'output window, operand 1']
    #allocation9 [shape = 's32[2]{0}', space=sflag, size = 0x8, scoped, tag = 'scoped memory for tpu_custom_call.1']
    %9 = vsyncpa [#allocation3], 0
    %s10 = scalar_lea.sflag [#allocation3], 1
    %11 = vsyncpa %s10, 0
    %12 = vsyncpa [#allocation6], 0
    %13 = vsyncpa [#allocation4], 0
    %s14 = scalar_lea.sflag [#allocation4], 1
    %15 = vsyncpa %s14, 0
    %16 = vsyncpa [#allocation9], 0
    %s17 = scalar_lea.sflag [#allocation9], 1
    %18 = vsyncpa %s17, 0
    loop: start=0, step=1, limit=8
    $region2: #{tpu_custom_call.1} parent=1 // loop_pre_header
      _
    $region3: #{tpu_custom_call.1} parent=1 // loop_header
      %s20 = sphi 0, %s24
      %p21 = scmp.ge.s32.totalorder %s20, 8
      %s27 = sphi 0, %s39
      %s28 = sphi 0, %s35
      %s29 = sphi 0, %s27
      %s30 = sphi 0, %s28
      %s31 = sphi 0, %s29
      %s32 = sphi 0, %s30
      %s46 = sphi 0, %s48
      %s49 = sphi 0, %s46
      %s50 = sphi 0, %s49
      %s66 = sphi 0, %s50
      %s70 = sphi 0, %s70
      %s72 = sphi 0, %s70
      %s73 = sphi 0, %s72
      %s87 = sphi 0, %s73
      %s93 = sphi 0, %s95
      %s96 = sphi 0, %s93
      %s97 = sphi 0, %s96
      %s113 = sphi 0, %s97
      %s119 = sphi 0, %s121
      %s122 = sphi 0, %s119
      %s123 = sphi 0, %s122
      %s139 = sphi 0, %s123
    $region4: #{tpu_custom_call.1} parent=1 // loop_header_branch
      %23 = sbr.rel (%p21) target = $region8
    $region5: #{tpu_custom_call.1} parent=1 // loop_body
      %s25 = ssub.s32 %s20, 1
      %s26 = ssub.s32 %s20, 2
      %s33 = sadd.s32 1, %s28
      %p34 = scmp.ge.s32.totalorder %s33, 3
      %s35 = scalar_select %p34, 0, %s33
      %s36 = sadd.s32 1, %s27
      %s37 = scalar_select %p34, %s36, %s27
      %p38 = scmp.ge.s32.totalorder %s37, 2
      %s39 = scalar_select %p38, 0, %s37
      %s40 = smul.u32 %s27, 3
      %s41 = sadd.s32 %s40, %s28
      %s42 = smul.u32 %s39, 3
      %s43 = sadd.s32 %s42, %s35
      %s44 = ssub.s32 %s41, %s43
      %p45 = scmp.eq.s32.totalorder %s44, 0
      %s47 = sadd.s32 %s46, 1
      %s48 = scalar_select %p45, %s46, %s47
      %p51 = pneg %p45
      %p52 = scmp.eq.s32.totalorder %s20, 5
      %p53 = por %p51, %p52
      %p54 = scmp.ne.s32.totalorder %s46, %s49
      %p55 = scmp.eq.s32.totalorder %s20, 0
      %p56 = por %p54, %p55
      %p57 = scmp.ne.s32.totalorder %s46, %s49
      %p58 = scmp.eq.s32.totalorder %s25, 5
      %p59 = por %p57, %p58
      %p60 = scmp.ne.s32.totalorder %s49, %s50
      %p61 = scmp.eq.s32.totalorder %s25, 0
      %p62 = por %p60, %p61
      %p63 = scmp.ne.s32.totalorder %s49, %s50
      %p64 = scmp.eq.s32.totalorder %s26, 5
      %p65 = por %p63, %p64
      %p67 = scmp.ne.s32.totalorder %s50, %s66
      %p68 = scmp.eq.s32.totalorder %s26, 0
      %p69 = por %p67, %p68
      %s71 = sadd.s32 %s70, 1
      %p74 = scmp.eq.s32.totalorder %s20, 5
      %p75 = scmp.ne.s32.totalorder %s70, %s72
      %p76 = scmp.eq.s32.totalorder %s20, 0
      %p77 = por %p75, %p76
      %p78 = scmp.ne.s32.totalorder %s70, %s72
      %p79 = scmp.eq.s32.totalorder %s25, 5
      %p80 = por %p78, %p79
      %p81 = scmp.ne.s32.totalorder %s72, %s73
      %p82 = scmp.eq.s32.totalorder %s25, 0
      %p83 = por %p81, %p82
      %p84 = scmp.ne.s32.totalorder %s72, %s73
      %p85 = scmp.eq.s32.totalorder %s26, 5
      %p86 = por %p84, %p85
      %p88 = scmp.ne.s32.totalorder %s73, %s87
      %p89 = scmp.eq.s32.totalorder %s26, 0
      %p90 = por %p88, %p89
      %s91 = ssub.s32 %s27, %s39
      %p92 = scmp.eq.s32.totalorder %s91, 0
      %s94 = sadd.s32 %s93, 1
      %s95 = scalar_select %p92, %s93, %s94
      %p98 = pneg %p92
      %p99 = scmp.eq.s32.totalorder %s20, 5
      %p100 = por %p98, %p99
      %p101 = scmp.ne.s32.totalorder %s93, %s96
      %p102 = scmp.eq.s32.totalorder %s20, 0
      %p103 = por %p101, %p102
      %p104 = scmp.ne.s32.totalorder %s93, %s96
      %p105 = scmp.eq.s32.totalorder %s25, 5
      %p106 = por %p104, %p105
      %p107 = scmp.ne.s32.totalorder %s96, %s97
      %p108 = scmp.eq.s32.totalorder %s25, 0
      %p109 = por %p107, %p108
      %p110 = scmp.ne.s32.totalorder %s96, %s97
      %p111 = scmp.eq.s32.totalorder %s26, 5
      %p112 = por %p110, %p111
      %p114 = scmp.ne.s32.totalorder %s97, %s113
      %p115 = scmp.eq.s32.totalorder %s26, 0
      %p116 = por %p114, %p115
      %s117 = ssub.s32 %s27, %s39
      %p118 = scmp.eq.s32.totalorder %s117, 0
      %s120 = sadd.s32 %s119, 1
      %s121 = scalar_select %p118, %s119, %s120
      %p124 = pneg %p118
      %p125 = scmp.eq.s32.totalorder %s20, 5
      %p126 = por %p124, %p125
      %p127 = scmp.ne.s32.totalorder %s119, %s122
      %p128 = scmp.eq.s32.totalorder %s20, 0
      %p129 = por %p127, %p128
      %p130 = scmp.ne.s32.totalorder %s119, %s122
      %p131 = scmp.eq.s32.totalorder %s25, 5
      %p132 = por %p130, %p131
      %p133 = scmp.ne.s32.totalorder %s122, %s123
      %p134 = scmp.eq.s32.totalorder %s25, 0
      %p135 = por %p133, %p134
      %p136 = scmp.ne.s32.totalorder %s122, %s123
      %p137 = scmp.eq.s32.totalorder %s26, 5
      %p138 = por %p136, %p137
      %p140 = scmp.ne.s32.totalorder %s123, %s139
      %p141 = scmp.eq.s32.totalorder %s26, 0
      %p142 = por %p140, %p141
      %p143 = scmp.le.s32.totalorder 1, %s20
      %p144 = scmp.lt.s32.totalorder %s20, 7
      %p145 = pnand %p143, %p144
      %p146 = pneg %p145
      // Predicated region
      $region9: #{tpu_custom_call.1} parent=5 // pred_check
        _
      $region10: #{tpu_custom_call.1} parent=5 // pred_check_branch
        %148 = sbr.rel (%p145) target = $region12
      $region11: #{tpu_custom_call.1} parent=5 // pred_region
        %s149 = ssub.s32 %s20, 1
        // Predicated region
        $region13: #{tpu_custom_call.1} parent=11 // pred_check
          %p150 = pneg %p83
        $region14: #{tpu_custom_call.1} parent=11 // pred_check_branch
          %152 = sbr.rel (%p150) target = $region16
        $region15: #{tpu_custom_call.1} parent=11 // pred_region
          %s154 = ssub.s32 1024, 1024
          %155 = vsyncadd [#allocation6], %s154
          %s156 = sshll.u32 [#allocation5], 4
          %s157 = int_to_ptr.vmem [resolvable:$true] %s156
          %162 = dma.hbm_to_vmem [thread:$0]  %s1, 1024, %s157, [#allocation6], 64, 64, 4
        $region16: #{tpu_custom_call.1} parent=11 // pred_fallthru
          _
      $region12: #{tpu_custom_call.1} parent=5 // pred_fallthru
        _
      %p163 = scmp.lt.s32.totalorder %s20, 6
      // Predicated region
      $region17: #{tpu_custom_call.1} parent=5 // pred_check
        %p164 = pneg %p163
      $region18: #{tpu_custom_call.1} parent=5 // pred_check_branch
        %166 = sbr.rel (%p164) target = $region20
      $region19: #{tpu_custom_call.1} parent=5 // pred_region
        // Predicated region
        $region21: #{tpu_custom_call.1} parent=19 // pred_check
          %p167 = pneg %p56
        $region22: #{tpu_custom_call.1} parent=19 // pred_check_branch
          %169 = sbr.rel (%p167) target = $region24
        $region23: #{tpu_custom_call.1} parent=19 // pred_region
          %s170 = sand.u32 %s46, 1
          %s171 = scalar_lea.sflag [#allocation3], %s170
          %s172 = sand.u32 %s46, 1
          %s173 = smul.addr %s172, 8
          %s174 = scalar_lea.vmem [#allocation2], %s173
          %s175 = smul.u32 %s27, 3
          %s176 = sadd.s32 %s175, %s28
          %s177 = smul.u32 2, %s176
          %s179 = ssub.s32 128, 128
          %180 = vsyncadd %s171, %s179
          %s181 = smul.addr %s177, 64
          %s182 = scalar_lea.hbm %s0, %s181
          %s183 = sshll.u32 %s174, 4
          %s184 = int_to_ptr.vmem [resolvable:$true] %s183
          %189 = dma.hbm_to_vmem [thread:$0]  %s182, 128, %s184, %s171, 64, 64, 4
        $region24: #{tpu_custom_call.1} parent=19 // pred_fallthru
          _
      $region20: #{tpu_custom_call.1} parent=5 // pred_fallthru
        _
      %p190 = scmp.le.s32.totalorder 1, %s20
      %p191 = scmp.lt.s32.totalorder %s20, 7
      %p192 = pnand %p190, %p191
      %p193 = pneg %p192
      // Predicated region
      $region25: #{tpu_custom_call.1} parent=5 // pred_check
        _
      $region26: #{tpu_custom_call.1} parent=5 // pred_check_branch
        %195 = sbr.rel (%p192) target = $region28
      $region27: #{tpu_custom_call.1} parent=5 // pred_region
        %s196 = ssub.s32 %s20, 1
        %s197 = sand.u32 %s49, 1
        %s198 = scalar_lea.sflag [#allocation3], %s197
        %s199 = sand.u32 %s49, 1
        %s200 = smul.addr %s199, 8
        %s201 = scalar_lea.vmem [#allocation2], %s200
        // Predicated region
        $region29: #{tpu_custom_call.1} parent=27 // pred_check
          %p202 = pneg %p62
        $region30: #{tpu_custom_call.1} parent=27 // pred_check_branch
          %204 = sbr.rel (%p202) target = $region32
        $region31: #{tpu_custom_call.1} parent=27 // pred_region
          %205 = dma.done %s198, 128
        $region32: #{tpu_custom_call.1} parent=27 // pred_fallthru
          _
        // Predicated region
        $region33: #{tpu_custom_call.1} parent=27 // pred_check
          %p206 = pneg %p83
        $region34: #{tpu_custom_call.1} parent=27 // pred_check_branch
          %208 = sbr.rel (%p206) target = $region36
        $region35: #{tpu_custom_call.1} parent=27 // pred_region
          %209 = dma.done [#allocation6], 1024
        $region36: #{tpu_custom_call.1} parent=27 // pred_fallthru
          _
        %s210 = sand.u32 %s49, 1
        %s211 = scalar_lea.sflag [#allocation3], %s210
        %s212 = sand.u32 %s49, 1
        %s213 = smul.addr %s212, 8
        %s214 = scalar_lea.vmem [#allocation2], %s213
        %p215 = pneg %p62
        %p216 = pneg %p59
        %p217 = pneg %p83
        %p218 = pneg %p80
        %p219 = pneg %p109
        %p220 = pneg %p106
        %s221 = sand.u32 %s96, 1
        %s222 = scalar_lea.sflag [#allocation4], %s221
        %s223 = sand.u32 %s96, 1
        %s224 = smul.addr %s223, 8
        %s225 = scalar_lea.vmem [#allocation7], %s224
        %p226 = pneg %p135
        %p227 = pneg %p132
        %s228 = sand.u32 %s122, 1
        %s229 = scalar_lea.sflag [#allocation9], %s228
        %s230 = sand.u32 %s122, 1
        %s231 = smul.addr %s230, 8
        %s232 = scalar_lea.vmem [#allocation8], %s231
        %s233 = smul.u32 %s29, 3
        %s234 = sadd.s32 %s233, %s30
        %s235 = smul.u32 2, %s234
        %p237 = scmp.eq.s32.totalorder %s30, 0
        // Predicated region
        $region37: #{tpu_custom_call.1} parent=27 // pred_check
          %p238 = pneg %p237
        $region38: #{tpu_custom_call.1} parent=27 // pred_check_branch
          %240 = sbr.rel (%p238) target = $region40
        $region39: #{tpu_custom_call.1} parent=27 // pred_region
          %241 = vst [vmem:[%s225] sm:$0xff] 0.0
          %242 = vst [vmem:[%s232] sm:$0xff] 0.0
        $region40: #{tpu_custom_call.1} parent=27 // pred_fallthru
          _
        %v243 = vld [vmem:[%s201] sm:$0xf]
        %v244 = vld [vmem:[%s201 + $0x4] sm:$0xf]
        %v245 = vld [vmem:[#allocation5] sm:$0xf]
        %v246 = vld [vmem:[#allocation5 + $0x4] sm:$0xf]
        %v247 = vld [vmem:[#allocation5 + $0x8] sm:$0xf]
        %v248 = vld [vmem:[#allocation5 + $0xc] sm:$0xf]
        %v249 = vld [vmem:[#allocation5 + $0x10] sm:$0xf]
        %v250 = vld [vmem:[#allocation5 + $0x14] sm:$0xf]
        %v251 = vld [vmem:[#allocation5 + $0x18] sm:$0xf]
        %v252 = vld [vmem:[#allocation5 + $0x1c] sm:$0xf]
        %v253 = vld [vmem:[#allocation5 + $0x20] sm:$0xf]
        %v254 = vld [vmem:[#allocation5 + $0x24] sm:$0xf]
        %v255 = vld [vmem:[#allocation5 + $0x28] sm:$0xf]
        %v256 = vld [vmem:[#allocation5 + $0x2c] sm:$0xf]
        %v257 = vld [vmem:[#allocation5 + $0x30] sm:$0xf]
        %v258 = vld [vmem:[#allocation5 + $0x34] sm:$0xf]
        %v259 = vld [vmem:[#allocation5 + $0x38] sm:$0xf]
        %v260 = vld [vmem:[#allocation5 + $0x3c] sm:$0xf]
        %v263 = vunpack.c.l.b16 %v243
        %v264 = vunpack.c.l.b16 %v244
        %v265 = vpack.c.b16 %v264, %v263
        %v283 = vunpack.c.l.b16 %v245
        %v284 = vunpack.c.l.b16 %v246
        %v285 = vunpack.c.l.b16 %v247
        %v286 = vunpack.c.l.b16 %v248
        %v287 = vunpack.c.l.b16 %v249
        %v288 = vunpack.c.l.b16 %v250
        %v289 = vunpack.c.l.b16 %v251
        %v290 = vunpack.c.l.b16 %v252
        %v291 = vunpack.c.l.b16 %v253
        %v292 = vunpack.c.l.b16 %v254
        %v293 = vunpack.c.l.b16 %v255
        %v294 = vunpack.c.l.b16 %v256
        %v295 = vunpack.c.l.b16 %v257
        %v296 = vunpack.c.l.b16 %v258
        %v297 = vunpack.c.l.b16 %v259
        %v298 = vunpack.c.l.b16 %v260
        %v299 = vpack.c.b16 %v284, %v283
        %v300 = vpack.c.b16 %v286, %v285
        %v301 = vpack.c.b16 %v288, %v287
        %v302 = vpack.c.b16 %v290, %v289
        %v303 = vpack.c.b16 %v292, %v291
        %v304 = vpack.c.b16 %v294, %v293
        %v305 = vpack.c.b16 %v296, %v295
        %v306 = vpack.c.b16 %v298, %v297
        %315 = vmatprep.subr.bf16.mxu0 0
        %316 = vmatpush1.bf16.msra.mxu0 %v299
        %317 = vmatprep.subr.bf16.mxu0 0
        %318 = vmatpush1.bf16.msra.mxu0 %v300
        %319 = vmatprep.subr.bf16.mxu0 0
        %320 = vmatpush1.bf16.msra.mxu0 %v301
        %321 = vmatprep.subr.bf16.mxu0 0
        %322 = vmatpush1.bf16.msra.mxu0 %v302
        %323 = vmatprep.subr.bf16.mxu0 0
        %324 = vmatpush1.bf16.msra.mxu0 %v303
        %325 = vmatprep.subr.bf16.mxu0 0
        %326 = vmatpush1.bf16.msra.mxu0 %v304
        %327 = vmatprep.subr.bf16.mxu0 0
        %328 = vmatpush1.bf16.msra.mxu0 %v305
        %329 = vmatprep.subr.bf16.mxu0 0
        %330 = vmatpush1.bf16.msra.mxu0 %v306
        %331 = vmatprep.subr.bf16.mxu0 0
        %332 = vmatpush1.bf16.msra.mxu0 0
        %333 = vmatprep.subr.bf16.mxu0 0
        %334 = vmatpush1.bf16.msra.mxu0 0
        %335 = vmatprep.subr.bf16.mxu0 0
        %336 = vmatpush1.bf16.msra.mxu0 0
        %337 = vmatprep.subr.bf16.mxu0 0
        %338 = vmatpush1.bf16.msra.mxu0 0
        %339 = vmatprep.subr.bf16.mxu0 0
        %340 = vmatpush1.bf16.msra.mxu0 0
        %341 = vmatprep.subr.bf16.mxu0 0
        %342 = vmatpush1.bf16.msra.mxu0 0
        %343 = vmatprep.subr.bf16.mxu0 0
        %344 = vmatpush1.bf16.msra.mxu0 0
        %345 = vmatprep.subr.bf16.mxu0 0
        %346 = vmatpush1.bf16.msra.mxu0 0
        %347 = vmatprep.mubr.bf16.mxu0 0
        %348 = vmatmul.mubr.bf16.gmra.mrb[0].mxu0 %v265
        %v349 = vpop.f32.mrb[0].mxu0
        %v350 = vadd.f32 0.0, %v349
        %v351 = vpop.f32.mrb[0].mxu0
        %v352 = vpop.f32.mrb[0].mxu0
        %v353 = vadd.f32 0.0, %v352
        %v354 = vpop.f32.mrb[0].mxu0
        %355 = vdwg.mxu0
        %v356 = vmax.f32 %v350, 0.0
        %v357 = vmax.f32 %v353, 0.0
        %v358 = vld [vmem:[%s225] sm:$0xff]
        %vm359 = vcmask 130048
        %v361 = vsel %vm359, 1.0, 0
        %363 = vmatprep.subr.mxu0 0.0
        %364 = vmatpush1.msra.mxu0 %v356
        %365 = vmatprep.subr.mxu0 0.0
        %366 = vmatpush1.msra.mxu0 %v357
        %367 = vmatprep.subr.mxu0 0.0
        %368 = vmatpush1.msra.mxu0 0.0
        %369 = vmatprep.subr.mxu0 0.0
        %370 = vmatpush1.msra.mxu0 0.0
        %371 = vmatprep.subr.mxu0 0.0
        %372 = vmatpush1.msra.mxu0 0.0
        %373 = vmatprep.subr.mxu0 0.0
        %374 = vmatpush1.msra.mxu0 0.0
        %375 = vmatprep.subr.mxu0 0.0
        %376 = vmatpush1.msra.mxu0 0.0
        %377 = vmatprep.subr.mxu0 0.0
        %378 = vmatpush1.msra.mxu0 0.0
        %379 = vmatprep.subr.mxu0 0.0
        %380 = vmatpush1.msra.mxu0 0.0
        %381 = vmatprep.subr.mxu0 0.0
        %382 = vmatpush1.msra.mxu0 0.0
        %383 = vmatprep.subr.mxu0 0.0
        %384 = vmatpush1.msra.mxu0 0.0
        %385 = vmatprep.subr.mxu0 0.0
        %386 = vmatpush1.msra.mxu0 0.0
        %387 = vmatprep.subr.mxu0 0.0
        %388 = vmatpush1.msra.mxu0 0.0
        %389 = vmatprep.subr.mxu0 0.0
        %390 = vmatpush1.msra.mxu0 0.0
        %391 = vmatprep.subr.mxu0 0.0
        %392 = vmatpush1.msra.mxu0 0.0
        %393 = vmatprep.subr.mxu0 0.0
        %394 = vmatpush1.msra.mxu0 0.0
        %395 = vmatprep.subr.mxu0 0.0
        %396 = vmatpush1.msra.mxu0 0.0
        %397 = vmatprep.subr.mxu0 0.0
        %398 = vmatpush1.msra.mxu0 0.0
        %399 = vmatprep.subr.mxu0 0.0
        %400 = vmatpush1.msra.mxu0 0.0
        %401 = vmatprep.subr.mxu0 0.0
        %402 = vmatpush1.msra.mxu0 0.0
        %403 = vmatprep.subr.mxu0 0.0
        %404 = vmatpush1.msra.mxu0 0.0
        %405 = vmatprep.subr.mxu0 0.0
        %406 = vmatpush1.msra.mxu0 0.0
        %407 = vmatprep.subr.mxu0 0.0
        %408 = vmatpush1.msra.mxu0 0.0
        %409 = vmatprep.subr.mxu0 0.0
        %410 = vmatpush1.msra.mxu0 0.0
        %411 = vmatprep.subr.mxu0 0.0
        %412 = vmatpush1.msra.mxu0 0.0
        %413 = vmatprep.subr.mxu0 0.0
        %414 = vmatpush1.msra.mxu0 0.0
        %415 = vmatprep.subr.mxu0 0.0
        %416 = vmatpush1.msra.mxu0 0.0
        %417 = vmatprep.subr.mxu0 0.0
        %418 = vmatpush1.msra.mxu0 0.0
        %419 = vmatprep.subr.mxu0 0.0
        %420 = vmatpush1.msra.mxu0 0.0
        %421 = vmatprep.subr.mxu0 0.0
        %422 = vmatpush1.msra.mxu0 0.0
        %423 = vmatprep.subr.mxu0 0.0
        %424 = vmatpush1.msra.mxu0 0.0
        %425 = vmatprep.subr.mxu0 0.0
        %426 = vmatpush1.msra.mxu0 0.0
        %427 = vmatprep.mubr.f32.mxu0 0.0
        %428 = vmatmul.mubr.f32.gmra.mrb[0].mxu0 %v361
        %v429 = vpop.f32.mrb[0].mxu0
        %v430 = vadd.f32 0.0, %v429
        %v431 = vpop.f32.mrb[0].mxu0
        %432 = vdwg.mxu0
        %v433 = vadd.f32 %v358, %v430
        %434 = vst [vmem:[%s225] sm:$0xff] %v433
        %v435 = vld [vmem:[%s232] sm:$0xff]
        %v436 = vmul.f32 %v356, %v356
        %v437 = vmul.f32 %v357, %v357
        %438 = vmatprep.subr.mxu0 0.0
        %439 = vmatpush1.msra.mxu0 %v436
        %440 = vmatprep.subr.mxu0 0.0
        %441 = vmatpush1.msra.mxu0 %v437
        %442 = vmatprep.subr.mxu0 0.0
        %443 = vmatpush1.msra.mxu0 0.0
        %444 = vmatprep.subr.mxu0 0.0
        %445 = vmatpush1.msra.mxu0 0.0
        %446 = vmatprep.subr.mxu0 0.0
        %447 = vmatpush1.msra.mxu0 0.0
        %448 = vmatprep.subr.mxu0 0.0
        %449 = vmatpush1.msra.mxu0 0.0
        %450 = vmatprep.subr.mxu0 0.0
        %451 = vmatpush1.msra.mxu0 0.0
        %452 = vmatprep.subr.mxu0 0.0
        %453 = vmatpush1.msra.mxu0 0.0
        %454 = vmatprep.subr.mxu0 0.0
        %455 = vmatpush1.msra.mxu0 0.0
        %456 = vmatprep.subr.mxu0 0.0
        %457 = vmatpush1.msra.mxu0 0.0
        %458 = vmatprep.subr.mxu0 0.0
        %459 = vmatpush1.msra.mxu0 0.0
        %460 = vmatprep.subr.mxu0 0.0
        %461 = vmatpush1.msra.mxu0 0.0
        %462 = vmatprep.subr.mxu0 0.0
        %463 = vmatpush1.msra.mxu0 0.0
        %464 = vmatprep.subr.mxu0 0.0
        %465 = vmatpush1.msra.mxu0 0.0
        %466 = vmatprep.subr.mxu0 0.0
        %467 = vmatpush1.msra.mxu0 0.0
        %468 = vmatprep.subr.mxu0 0.0
        %469 = vmatpush1.msra.mxu0 0.0
        %470 = vmatprep.subr.mxu0 0.0
        %471 = vmatpush1.msra.mxu0 0.0
        %472 = vmatprep.subr.mxu0 0.0
        %473 = vmatpush1.msra.mxu0 0.0
        %474 = vmatprep.subr.mxu0 0.0
        %475 = vmatpush1.msra.mxu0 0.0
        %476 = vmatprep.subr.mxu0 0.0
        %477 = vmatpush1.msra.mxu0 0.0
        %478 = vmatprep.subr.mxu0 0.0
        %479 = vmatpush1.msra.mxu0 0.0
        %480 = vmatprep.subr.mxu0 0.0
        %481 = vmatpush1.msra.mxu0 0.0
        %482 = vmatprep.subr.mxu0 0.0
        %483 = vmatpush1.msra.mxu0 0.0
        %484 = vmatprep.subr.mxu0 0.0
        %485 = vmatpush1.msra.mxu0 0.0
        %486 = vmatprep.subr.mxu0 0.0
        %487 = vmatpush1.msra.mxu0 0.0
        %488 = vmatprep.subr.mxu0 0.0
        %489 = vmatpush1.msra.mxu0 0.0
        %490 = vmatprep.subr.mxu0 0.0
        %491 = vmatpush1.msra.mxu0 0.0
        %492 = vmatprep.subr.mxu0 0.0
        %493 = vmatpush1.msra.mxu0 0.0
        %494 = vmatprep.subr.mxu0 0.0
        %495 = vmatpush1.msra.mxu0 0.0
        %496 = vmatprep.subr.mxu0 0.0
        %497 = vmatpush1.msra.mxu0 0.0
        %498 = vmatprep.subr.mxu0 0.0
        %499 = vmatpush1.msra.mxu0 0.0
        %500 = vmatprep.subr.mxu0 0.0
        %501 = vmatpush1.msra.mxu0 0.0
        %502 = vmatprep.mubr.f32.mxu0 0.0
        %503 = vmatmul.mubr.f32.gmra.mrb[0].mxu0 %v361
        %v504 = vpop.f32.mrb[0].mxu0
        %v505 = vadd.f32 0.0, %v504
        %v506 = vpop.f32.mrb[0].mxu0
        %507 = vdwg.mxu0
        %v508 = vadd.f32 %v435, %v505
        %509 = vst [vmem:[%s232] sm:$0xff] %v508
        %s510 = sand.u32 %s96, 1
        %s511 = scalar_lea.sflag [#allocation4], %s510
        %s512 = sand.u32 %s96, 1
        %s513 = smul.addr %s512, 8
        %s514 = scalar_lea.vmem [#allocation7], %s513
        %s515 = sand.u32 %s122, 1
        %s516 = scalar_lea.sflag [#allocation9], %s515
        %s517 = sand.u32 %s122, 1
        %s518 = smul.addr %s517, 8
        %s519 = scalar_lea.vmem [#allocation8], %s518
        // Predicated region
        $region41: #{tpu_custom_call.1} parent=27 // pred_check
          %p520 = pneg %p106
        $region42: #{tpu_custom_call.1} parent=27 // pred_check_branch
          %522 = sbr.rel (%p520) target = $region44
        $region43: #{tpu_custom_call.1} parent=27 // pred_region
          %s524 = ssub.s32 128, 128
          %525 = vsyncadd %s511, %s524
          %s526 = smul.addr %s29, 128
          %s527 = scalar_lea.hbm %s2, %s526
          %s529 = sshll.u32 %s514, 4
          %s530 = int_to_ptr.vmem [resolvable:$true] %s529
          %532 = dma.vmem_to_hbm [thread:$0]  %s530, 128, %s527, %s511
        $region44: #{tpu_custom_call.1} parent=27 // pred_fallthru
          _
        // Predicated region
        $region45: #{tpu_custom_call.1} parent=27 // pred_check
          %p533 = pneg %p132
        $region46: #{tpu_custom_call.1} parent=27 // pred_check_branch
          %535 = sbr.rel (%p533) target = $region48
        $region47: #{tpu_custom_call.1} parent=27 // pred_region
          %s537 = ssub.s32 128, 128
          %538 = vsyncadd %s516, %s537
          %s539 = smul.addr %s29, 128
          %s540 = scalar_lea.hbm %s3, %s539
          %s542 = sshll.u32 %s519, 4
          %s543 = int_to_ptr.vmem [resolvable:$true] %s542
          %545 = dma.vmem_to_hbm [thread:$0]  %s543, 128, %s540, %s516
        $region48: #{tpu_custom_call.1} parent=27 // pred_fallthru
          _
      $region28: #{tpu_custom_call.1} parent=5 // pred_fallthru
        _
      %p546 = scmp.le.s32.totalorder 2, %s20
      // Predicated region
      $region49: #{tpu_custom_call.1} parent=5 // pred_check
        %p547 = pneg %p546
      $region50: #{tpu_custom_call.1} parent=5 // pred_check_branch
        %549 = sbr.rel (%p547) target = $region52
      $region51: #{tpu_custom_call.1} parent=5 // pred_region
        %s550 = ssub.s32 %s20, 2
        // Predicated region
        $region53: #{tpu_custom_call.1} parent=51 // pred_check
          %p551 = pneg %p112
        $region54: #{tpu_custom_call.1} parent=51 // pred_check_branch
          %553 = sbr.rel (%p551) target = $region56
        $region55: #{tpu_custom_call.1} parent=51 // pred_region
          %s554 = sand.u32 %s97, 1
          %s555 = scalar_lea.sflag [#allocation4], %s554
          %s556 = sand.u32 %s97, 1
          %s557 = smul.addr %s556, 8
          %s558 = scalar_lea.vmem [#allocation7], %s557
          %559 = dma.done %s555, 128
        $region56: #{tpu_custom_call.1} parent=51 // pred_fallthru
          _
        // Predicated region
        $region57: #{tpu_custom_call.1} parent=51 // pred_check
          %p560 = pneg %p138
        $region58: #{tpu_custom_call.1} parent=51 // pred_check_branch
          %562 = sbr.rel (%p560) target = $region60
        $region59: #{tpu_custom_call.1} parent=51 // pred_region
          %s563 = sand.u32 %s123, 1
          %s564 = scalar_lea.sflag [#allocation9], %s563
          %s565 = sand.u32 %s123, 1
          %s566 = smul.addr %s565, 8
          %s567 = scalar_lea.vmem [#allocation8], %s566
          %568 = dma.done %s564, 128
        $region60: #{tpu_custom_call.1} parent=51 // pred_fallthru
          _
      $region52: #{tpu_custom_call.1} parent=5 // pred_fallthru
        _
    $region6: #{tpu_custom_call.1} parent=1 // loop_footer
      %s24 = sadd.s32 1, %s20
    $region7: #{tpu_custom_call.1} parent=1 // loop_footer_branch
      %19 = sbr.rel target = $region3
    $region8: #{tpu_custom_call.1} parent=1 // loop_exit
      _
    %569 = vsyncpa [#allocation3], 1
    %s570 = scalar_lea.sflag [#allocation3], 1
    %571 = vsyncpa %s570, 1
    %572 = vsyncpa [#allocation6], 1
    %573 = vsyncpa [#allocation4], 1
    %s574 = scalar_lea.sflag [#allocation4], 1
    %575 = vsyncpa %s574, 1
    %576 = vsyncpa [#allocation9], 1
    %s577 = scalar_lea.sflag [#allocation9], 1
    %578 = vsyncpa %s577, 1

</llo_original>
